<compile_context>
chip_gen: v7x
topology: tpu7x:2x2x1
jax: 0.10.0
libtpu: 0.0.40
codegen_flags: <defaults>
</compile_context>

<pallas_src>
import jax
import jax.numpy as jnp
from jax.experimental import pallas as pl
from jax.experimental.pallas import tpu as pltpu


HIDDEN_DIM = 128
STATE_DIM = 5
STATE_PAD = 8                  # state features zero-padded to sublane-friendly K
ACTION_DIM = 8                 # discrete_action_i_dim (synthetic choice)
HEAD_TOTAL = ACTION_DIM + 2    # bandwidth logits + mu + std
HEAD_PAD = 128                 # lane-dense fused-head / output-slab width
BATCH = 200                    # enough rows to amortize per-call overhead
TM = 128                       # batch tile height (MXU/sublane friendly)
# TODO(synk): on v6e/v7x, casting weights/activations to bf16 for the matmuls
# would halve weight DMA bytes; kept f32 here to preserve exact parity checks.


def _softplus(x):
    # Stable softplus without the explicit zeros_like broadcast of logaddexp.
    return jnp.maximum(x, 0.0) + jnp.log1p(jnp.exp(-jnp.abs(x)))


def policy_kernel(x_ref,
                  w1_ref, b1_ref,
                  w2_ref, b2_ref,
                  wh_ref, bh_ref,
                  out_ref):
    x = x_ref[...]

    # fc1 + relu   (K = STATE_PAD, zero-padded rows contribute nothing)
    h = jnp.dot(x, w1_ref[...], preferred_element_type=jnp.float32) + b1_ref[...]
    h = jnp.maximum(h, 0.0)

    # fc2 + relu
    h = jnp.dot(h, w2_ref[...], preferred_element_type=jnp.float32) + b2_ref[...]
    h = jnp.maximum(h, 0.0)

    # Fused head: one (TM,128) x (128,128) matmul covering bandwidth/mu/std.
    y = jnp.dot(h, wh_ref[...], preferred_element_type=jnp.float32) + bh_ref[...]

    # softplus(.) + 1 only on the mu/std lanes; bandwidth logits pass through.
    sp = _softplus(y) + 1.0
    lane = jax.lax.broadcasted_iota(jnp.int32, y.shape, 1)
    is_ab = (lane >= ACTION_DIM) & (lane < HEAD_TOTAL)
    out_ref[...] = jnp.where(is_ab, sp, y)


def pack_params(p):
    """Pack PyTorch-layout params into the fused, lane-padded kernel layout."""
    w1p = jnp.zeros((STATE_PAD, HIDDEN_DIM), jnp.float32).at[:STATE_DIM].set(p["w1"])
    wh = jnp.zeros((HIDDEN_DIM, HEAD_PAD), jnp.float32)
    wh = wh.at[:, :ACTION_DIM].set(p["wb"])
    wh = wh.at[:, ACTION_DIM:ACTION_DIM + 1].set(p["wmu"])
    wh = wh.at[:, ACTION_DIM + 1:HEAD_TOTAL].set(p["wstd"])
    bh = jnp.zeros((1, HEAD_PAD), jnp.float32)
    bh = bh.at[:, :ACTION_DIM].set(p["bb"])
    bh = bh.at[:, ACTION_DIM:ACTION_DIM + 1].set(p["bmu"])
    bh = bh.at[:, ACTION_DIM + 1:HEAD_TOTAL].set(p["bstd"])
    return dict(w1=w1p, b1=p["b1"], w2=p["w2"], b2=p["b2"], wh=wh, bh=bh)


def policy_net_pallas(x, packed, *, tm=TM):
    B = x.shape[0]
    b_pad = pl.cdiv(B, tm) * tm

    # Host-side layout plumbing: pad batch to a tile multiple and state to 8.
    xp = jnp.zeros((b_pad, STATE_PAD), jnp.float32)
    xp = xp.at[:B, :STATE_DIM].set(x)

    const = lambda i: (0, 0)   # weights/biases: same block every grid step

    out = pl.pallas_call(
        policy_kernel,
        out_shape=jax.ShapeDtypeStruct((b_pad, HEAD_PAD), jnp.float32),
        grid_spec=pltpu.PrefetchScalarGridSpec(
            num_scalar_prefetch=0,
            grid=(b_pad // tm,),
            in_specs=[
                pl.BlockSpec((tm, STATE_PAD), lambda i: (i, 0)),        # x tile
                pl.BlockSpec((STATE_PAD, HIDDEN_DIM), const),           # w1
                pl.BlockSpec((1, HIDDEN_DIM), const),                   # b1
                pl.BlockSpec((HIDDEN_DIM, HIDDEN_DIM), const),          # w2
                pl.BlockSpec((1, HIDDEN_DIM), const),                   # b2
                pl.BlockSpec((HIDDEN_DIM, HEAD_PAD), const),            # fused head W
                pl.BlockSpec((1, HEAD_PAD), const),                     # fused head b
            ],
            out_specs=pl.BlockSpec((tm, HEAD_PAD), lambda i: (i, 0)),
        ),
        compiler_params=pltpu.CompilerParams(
            dimension_semantics=("parallel",)),     # v7x: shard tiles over 2 TCs
    )(xp, packed["w1"], packed["b1"], packed["w2"], packed["b2"],
      packed["wh"], packed["bh"])

    band = out[:B, :ACTION_DIM]
    alpha = out[:B, ACTION_DIM:ACTION_DIM + 1]
    beta = out[:B, ACTION_DIM + 1:HEAD_TOTAL]
    return band, alpha, beta


def init_params(key):
    """Deterministic synthetic init (PyTorch-Linear-style uniform bounds)."""
    def linear(key, fan_in, fan_out):
        kw, kb = jax.random.split(key)
        bound = 1.0 / jnp.sqrt(jnp.float32(fan_in))
        w = jax.random.uniform(kw, (fan_in, fan_out), jnp.float32, -bound, bound)
        b = jax.random.uniform(kb, (1, fan_out), jnp.float32, -bound, bound)
        return w, b

    k1, k2, k3, k4, k5 = jax.random.split(key, 5)
    w1, b1 = linear(k1, STATE_DIM, HIDDEN_DIM)
    w2, b2 = linear(k2, HIDDEN_DIM, HIDDEN_DIM)
    wb, bb = linear(k3, HIDDEN_DIM, ACTION_DIM)
    wmu, bmu = linear(k4, HIDDEN_DIM, 1)
    wstd, bstd = linear(k5, HIDDEN_DIM, 1)
    return dict(w1=w1, b1=b1, w2=w2, b2=b2, wb=wb, bb=bb,
                wmu=wmu, bmu=bmu, wstd=wstd, bstd=bstd)


def policy_net_ref(x, p):
    h = jax.nn.relu(x @ p["w1"] + p["b1"])
    h = jax.nn.relu(h @ p["w2"] + p["b2"])
    band = h @ p["wb"] + p["bb"]
    alpha = jax.nn.softplus(h @ p["wmu"] + p["bmu"]) + 1.0
    beta = jax.nn.softplus(h @ p["wstd"] + p["bstd"]) + 1.0
    return band, alpha, beta


if __name__ == "__main__":
    key = jax.random.PRNGKey(0)
    kx, kp = jax.random.split(key)

    x = jax.random.normal(kx, (BATCH, STATE_DIM), dtype=jnp.float32)
    params = init_params(kp)
    packed = pack_params(params)

    band, alpha, beta = policy_net_pallas(x, packed)
    jax.block_until_ready((band, alpha, beta))

    # Cross-check against a plain-JAX reference implementation.
    band_r, alpha_r, beta_r = policy_net_ref(x, params)
    assert band.shape == (BATCH, ACTION_DIM)
    assert alpha.shape == (BATCH, 1) and beta.shape == (BATCH, 1)
    assert jnp.allclose(band, band_r, atol=1e-5, rtol=1e-5)
    assert jnp.allclose(alpha, alpha_r, atol=1e-5, rtol=1e-5)
    assert jnp.allclose(beta, beta_r, atol=1e-5, rtol=1e-5)

    print("KERNEL_OK")
</pallas_src>

<mosaic_0001>
module attributes {stable_mosaic.version = 11 : i64} {
  func.func @policy_kernel(%arg0: i32, %arg1: memref<128x8xf32, #tpu.memory_space<vmem>>, %arg2: memref<8x128xf32, #tpu.memory_space<vmem>>, %arg3: memref<1x128xf32, #tpu.memory_space<vmem>>, %arg4: memref<128x128xf32, #tpu.memory_space<vmem>>, %arg5: memref<1x128xf32, #tpu.memory_space<vmem>>, %arg6: memref<128x128xf32, #tpu.memory_space<vmem>>, %arg7: memref<1x128xf32, #tpu.memory_space<vmem>>, %arg8: memref<128x128xf32, #tpu.memory_space<vmem>>) attributes {dimension_semantics = [#tpu.dimension_semantics<parallel>], iteration_bounds = array<i64: 2>, scalar_prefetch = 0 : i64, scratch_operands = 0 : i64, tpu.core_type = #tpu.core_type<tc>, window_params = [{transform_indices = @transform_0, window_bounds = array<i64: 128, 8>}, {pipeline_mode = #tpu.pipeline_mode<synchronous>, transform_indices = @transform_1, window_bounds = array<i64: 8, 128>}, {pipeline_mode = #tpu.pipeline_mode<synchronous>, transform_indices = @transform_2, window_bounds = array<i64: 1, 128>}, {pipeline_mode = #tpu.pipeline_mode<synchronous>, transform_indices = @transform_3, window_bounds = array<i64: 128, 128>}, {pipeline_mode = #tpu.pipeline_mode<synchronous>, transform_indices = @transform_4, window_bounds = array<i64: 1, 128>}, {pipeline_mode = #tpu.pipeline_mode<synchronous>, transform_indices = @transform_5, window_bounds = array<i64: 128, 128>}, {pipeline_mode = #tpu.pipeline_mode<synchronous>, transform_indices = @transform_6, window_bounds = array<i64: 1, 128>}, {transform_indices = @transform_7, window_bounds = array<i64: 128, 128>}]} {
    %c0 = arith.constant 0 : index
    %c0_0 = arith.constant 0 : index
    %0 = vector.load %arg1[%c0, %c0_0] : memref<128x8xf32, #tpu.memory_space<vmem>>, vector<128x8xf32>
    %c0_1 = arith.constant 0 : index
    %c0_2 = arith.constant 0 : index
    %1 = vector.load %arg2[%c0_1, %c0_2] : memref<8x128xf32, #tpu.memory_space<vmem>>, vector<8x128xf32>
    %cst = arith.constant dense<0.000000e+00> : vector<128x128xf32>
    %2 = tpu.matmul %0, %1, %cst {dimension_numbers = #tpu.dot_dimension_numbers<[1], [0], [0], [1], [0, 0, 1, 1], [], []>} : vector<128x8xf32>, vector<8x128xf32>, vector<128x128xf32> -> vector<128x128xf32>
    %c0_3 = arith.constant 0 : index
    %c0_4 = arith.constant 0 : index
    %3 = vector.load %arg3[%c0_3, %c0_4] : memref<1x128xf32, #tpu.memory_space<vmem>>, vector<1x128xf32>
    %4 = vector.broadcast %3 : vector<1x128xf32> to vector<128x128xf32>
    %5 = arith.addf %2, %4 : vector<128x128xf32>
    %cst_5 = arith.constant 0.000000e+00 : f32
    %6 = vector.broadcast %cst_5 : f32 to vector<128x128xf32>
    %7 = arith.maximumf %5, %6 : vector<128x128xf32>
    %c0_6 = arith.constant 0 : index
    %c0_7 = arith.constant 0 : index
    %8 = vector.load %arg4[%c0_6, %c0_7] : memref<128x128xf32, #tpu.memory_space<vmem>>, vector<128x128xf32>
    %cst_8 = arith.constant dense<0.000000e+00> : vector<128x128xf32>
    %9 = tpu.matmul %7, %8, %cst_8 {dimension_numbers = #tpu.dot_dimension_numbers<[1], [0], [0], [1], [0, 0, 1, 1], [], []>} : vector<128x128xf32>, vector<128x128xf32>, vector<128x128xf32> -> vector<128x128xf32>
    %c0_9 = arith.constant 0 : index
    %c0_10 = arith.constant 0 : index
    %10 = vector.load %arg5[%c0_9, %c0_10] : memref<1x128xf32, #tpu.memory_space<vmem>>, vector<1x128xf32>
    %11 = vector.broadcast %10 : vector<1x128xf32> to vector<128x128xf32>
    %12 = arith.addf %9, %11 : vector<128x128xf32>
    %cst_11 = arith.constant 0.000000e+00 : f32
    %13 = vector.broadcast %cst_11 : f32 to vector<128x128xf32>
    %14 = arith.maximumf %12, %13 : vector<128x128xf32>
    %c0_12 = arith.constant 0 : index
    %c0_13 = arith.constant 0 : index
    %15 = vector.load %arg6[%c0_12, %c0_13] : memref<128x128xf32, #tpu.memory_space<vmem>>, vector<128x128xf32>
    %cst_14 = arith.constant dense<0.000000e+00> : vector<128x128xf32>
    %16 = tpu.matmul %14, %15, %cst_14 {dimension_numbers = #tpu.dot_dimension_numbers<[1], [0], [0], [1], [0, 0, 1, 1], [], []>} : vector<128x128xf32>, vector<128x128xf32>, vector<128x128xf32> -> vector<128x128xf32>
    %c0_15 = arith.constant 0 : index
    %c0_16 = arith.constant 0 : index
    %17 = vector.load %arg7[%c0_15, %c0_16] : memref<1x128xf32, #tpu.memory_space<vmem>>, vector<1x128xf32>
    %18 = vector.broadcast %17 : vector<1x128xf32> to vector<128x128xf32>
    %19 = arith.addf %16, %18 : vector<128x128xf32>
    %cst_17 = arith.constant 0.000000e+00 : f32
    %20 = vector.broadcast %cst_17 : f32 to vector<128x128xf32>
    %21 = arith.maximumf %19, %20 : vector<128x128xf32>
    %22 = math.absf %19 : vector<128x128xf32>
    %cst_18 = arith.constant 0.000000e+00 : f32
    %23 = vector.broadcast %cst_18 : f32 to vector<128x128xf32>
    %24 = arith.subf %23, %22 : vector<128x128xf32>
    %25 = math.exp %24 : vector<128x128xf32>
    %26 = math.log1p %25 : vector<128x128xf32>
    %27 = arith.addf %21, %26 : vector<128x128xf32>
    %cst_19 = arith.constant 1.000000e+00 : f32
    %28 = vector.broadcast %cst_19 : f32 to vector<128x128xf32>
    %29 = arith.addf %27, %28 : vector<128x128xf32>
    %30 = tpu.iota {dimensions = array<i32: 1>} : vector<128x128xi32>
    %c8_i32 = arith.constant 8 : i32
    %31 = vector.broadcast %c8_i32 : i32 to vector<128x128xi32>
    %32 = arith.cmpi sge, %30, %31 : vector<128x128xi32>
    %c10_i32 = arith.constant 10 : i32
    %33 = vector.broadcast %c10_i32 : i32 to vector<128x128xi32>
    %34 = arith.cmpi slt, %30, %33 : vector<128x128xi32>
    %35 = arith.andi %32, %34 : vector<128x128xi1>
    %36 = arith.select %35, %29, %19 : vector<128x128xi1>, vector<128x128xf32>
    %c0_20 = arith.constant 0 : index
    %c0_21 = arith.constant 0 : index
    %37 = vector.load %arg8[%c0_20, %c0_21] : memref<128x128xf32, #tpu.memory_space<vmem>>, vector<128x128xf32>
    tpu.vector_store %arg8[%c0_20, %c0_21], %36 {strides = array<i32>} : memref<128x128xf32, #tpu.memory_space<vmem>>, vector<128x128xf32>,
    return
  }
  func.func @transform_0(%arg0: i32) -> (i32, i32) {
    %c0_i32 = arith.constant 0 : i32
    %c0_i32_0 = arith.constant 0 : i32
    return %arg0, %c0_i32 : i32, i32
  }
  func.func @transform_1(%arg0: i32) -> (i32, i32) {
    %c0_i32 = arith.constant 0 : i32
    %c0_i32_0 = arith.constant 0 : i32
    %c0_i32_1 = arith.constant 0 : i32
    return %c0_i32, %c0_i32_0 : i32, i32
  }
  func.func @transform_2(%arg0: i32) -> (i32, i32) {
    %c0_i32 = arith.constant 0 : i32
    %c0_i32_0 = arith.constant 0 : i32
    %c0_i32_1 = arith.constant 0 : i32
    return %c0_i32, %c0_i32_0 : i32, i32
  }
  func.func @transform_3(%arg0: i32) -> (i32, i32) {
    %c0_i32 = arith.constant 0 : i32
    %c0_i32_0 = arith.constant 0 : i32
    %c0_i32_1 = arith.constant 0 : i32
    return %c0_i32, %c0_i32_0 : i32, i32
  }
  func.func @transform_4(%arg0: i32) -> (i32, i32) {
    %c0_i32 = arith.constant 0 : i32
    %c0_i32_0 = arith.constant 0 : i32
    %c0_i32_1 = arith.constant 0 : i32
    return %c0_i32, %c0_i32_0 : i32, i32
  }
  func.func @transform_5(%arg0: i32) -> (i32, i32) {
    %c0_i32 = arith.constant 0 : i32
    %c0_i32_0 = arith.constant 0 : i32
    %c0_i32_1 = arith.constant 0 : i32
    return %c0_i32, %c0_i32_0 : i32, i32
  }
  func.func @transform_6(%arg0: i32) -> (i32, i32) {
    %c0_i32 = arith.constant 0 : i32
    %c0_i32_0 = arith.constant 0 : i32
    %c0_i32_1 = arith.constant 0 : i32
    return %c0_i32, %c0_i32_0 : i32, i32
  }
  func.func @transform_7(%arg0: i32) -> (i32, i32) {
    %c0_i32 = arith.constant 0 : i32
    %c0_i32_0 = arith.constant 0 : i32
    return %arg0, %c0_i32 : i32, i32
  }
}

</mosaic_0001>

<llo_original>
// kernel: tpu_custom_call.1
$region0: #{tpu_custom_call.1}
  #allocation0 [shape = 'u32[]', space=smem, size = 0x4, offset = 0x4, fixed_abs, tag = 'smem constant byte address 0x4 - core index']
  #allocation1 [shape = 'u32[144,128]{1,0:T(1,128)}', space=vmem, size = 0x12000, scoped, tag = 'internal scratch']
  %s0 = inlined_call_operand.vmem [shape: f32[256,8], index: 0, kind: input, shape index: {}]
  %s1 = inlined_call_operand.vmem [shape: f32[8,128], index: 1, kind: input, shape index: {}]
  %s2 = inlined_call_operand.vmem [shape: f32[1,128], index: 2, kind: input, shape index: {}]
  %s3 = inlined_call_operand.vmem [shape: f32[128,128], index: 3, kind: input, shape index: {}]
  %s4 = inlined_call_operand.vmem [shape: f32[1,128], index: 4, kind: input, shape index: {}]
  %s5 = inlined_call_operand.vmem [shape: f32[128,128], index: 5, kind: input, shape index: {}]
  %s6 = inlined_call_operand.vmem [shape: f32[1,128], index: 6, kind: input, shape index: {}]
  %s7 = inlined_call_operand.hbm [shape: f32[256,128], index: 7, kind: output, shape index: {}]
  %s8 = sld [smem:[#allocation0]]
  $region61: #{tpu_custom_call.1} parent=0
    _
  %s10 = ssub.s32 1, %s8
  %s11 = scalar_select 0, %s10, %s8
  $region1: #{tpu_custom_call.1} parent=0
    #allocation2 [shape = 'u8[131072]{0}', space=vmem, size = 0x20000, scoped, tag = 'output window, operand 0']
    #allocation3 [shape = 's32[2]{0}', space=sflag, size = 0x8, scoped, tag = 'scoped memory for tpu_custom_call.1']
    %12 = vsyncpa [#allocation3], 0
    %s13 = scalar_lea.sflag [#allocation3], 1
    %14 = vsyncpa %s13, 0
    loop: start=0, step=1, limit=4
    $region2: #{tpu_custom_call.1} parent=1 // loop_pre_header
      _
    $region3: #{tpu_custom_call.1} parent=1 // loop_header
      %s16 = sphi 0, %s20
      %p17 = scmp.ge.s32.totalorder %s16, 4
      %s26 = sphi 0, %s28
      %s29 = sphi 0, %s26
      %s30 = sphi 0, %s29
      %s46 = sphi 0, %s30
      %s50 = sphi 0, %s50
      %s52 = sphi 0, %s50
      %s53 = sphi 0, %s52
      %s67 = sphi 0, %s53
      %s71 = sphi 0, %s71
      %s73 = sphi 0, %s71
      %s74 = sphi 0, %s73
      %s88 = sphi 0, %s74
      %s92 = sphi 0, %s92
      %s94 = sphi 0, %s92
      %s95 = sphi 0, %s94
      %s109 = sphi 0, %s95
      %s113 = sphi 0, %s113
      %s115 = sphi 0, %s113
      %s116 = sphi 0, %s115
      %s130 = sphi 0, %s116
      %s134 = sphi 0, %s134
      %s136 = sphi 0, %s134
      %s137 = sphi 0, %s136
      %s151 = sphi 0, %s137
      %s155 = sphi 0, %s155
      %s157 = sphi 0, %s155
      %s158 = sphi 0, %s157
      %s172 = sphi 0, %s158
      %s178 = sphi 0, %s180
      %s181 = sphi 0, %s178
      %s182 = sphi 0, %s181
      %s198 = sphi 0, %s182
    $region4: #{tpu_custom_call.1} parent=1 // loop_header_branch
      %19 = sbr.rel (%p17) target = $region8
    $region5: #{tpu_custom_call.1} parent=1 // loop_body
      %s21 = ssub.s32 %s16, 1
      %s22 = ssub.s32 %s16, 2
      %s23 = sadd.s32 %s16, 1
      %s24 = ssub.s32 %s16, %s23
      %p25 = scmp.eq.s32.totalorder %s24, 0
      %s27 = sadd.s32 %s26, 1
      %s28 = scalar_select %p25, %s26, %s27
      %p31 = pneg %p25
      %p32 = scmp.eq.s32.totalorder %s16, 1
      %p33 = por %p31, %p32
      %p34 = scmp.ne.s32.totalorder %s26, %s29
      %p35 = scmp.eq.s32.totalorder %s16, 0
      %p36 = por %p34, %p35
      %p37 = scmp.ne.s32.totalorder %s26, %s29
      %p38 = scmp.eq.s32.totalorder %s21, 1
      %p39 = por %p37, %p38
      %p40 = scmp.ne.s32.totalorder %s29, %s30
      %p41 = scmp.eq.s32.totalorder %s21, 0
      %p42 = por %p40, %p41
      %p43 = scmp.ne.s32.totalorder %s29, %s30
      %p44 = scmp.eq.s32.totalorder %s22, 1
      %p45 = por %p43, %p44
      %p47 = scmp.ne.s32.totalorder %s30, %s46
      %p48 = scmp.eq.s32.totalorder %s22, 0
      %p49 = por %p47, %p48
      %s51 = sadd.s32 %s50, 1
      %p54 = scmp.eq.s32.totalorder %s16, 1
      %p55 = scmp.ne.s32.totalorder %s50, %s52
      %p56 = scmp.eq.s32.totalorder %s16, 0
      %p57 = por %p55, %p56
      %p58 = scmp.ne.s32.totalorder %s50, %s52
      %p59 = scmp.eq.s32.totalorder %s21, 1
      %p60 = por %p58, %p59
      %p61 = scmp.ne.s32.totalorder %s52, %s53
      %p62 = scmp.eq.s32.totalorder %s21, 0
      %p63 = por %p61, %p62
      %p64 = scmp.ne.s32.totalorder %s52, %s53
      %p65 = scmp.eq.s32.totalorder %s22, 1
      %p66 = por %p64, %p65
      %p68 = scmp.ne.s32.totalorder %s53, %s67
      %p69 = scmp.eq.s32.totalorder %s22, 0
      %p70 = por %p68, %p69
      %s72 = sadd.s32 %s71, 1
      %p75 = scmp.eq.s32.totalorder %s16, 1
      %p76 = scmp.ne.s32.totalorder %s71, %s73
      %p77 = scmp.eq.s32.totalorder %s16, 0
      %p78 = por %p76, %p77
      %p79 = scmp.ne.s32.totalorder %s71, %s73
      %p80 = scmp.eq.s32.totalorder %s21, 1
      %p81 = por %p79, %p80
      %p82 = scmp.ne.s32.totalorder %s73, %s74
      %p83 = scmp.eq.s32.totalorder %s21, 0
      %p84 = por %p82, %p83
      %p85 = scmp.ne.s32.totalorder %s73, %s74
      %p86 = scmp.eq.s32.totalorder %s22, 1
      %p87 = por %p85, %p86
      %p89 = scmp.ne.s32.totalorder %s74, %s88
      %p90 = scmp.eq.s32.totalorder %s22, 0
      %p91 = por %p89, %p90
      %s93 = sadd.s32 %s92, 1
      %p96 = scmp.eq.s32.totalorder %s16, 1
      %p97 = scmp.ne.s32.totalorder %s92, %s94
      %p98 = scmp.eq.s32.totalorder %s16, 0
      %p99 = por %p97, %p98
      %p100 = scmp.ne.s32.totalorder %s92, %s94
      %p101 = scmp.eq.s32.totalorder %s21, 1
      %p102 = por %p100, %p101
      %p103 = scmp.ne.s32.totalorder %s94, %s95
      %p104 = scmp.eq.s32.totalorder %s21, 0
      %p105 = por %p103, %p104
      %p106 = scmp.ne.s32.totalorder %s94, %s95
      %p107 = scmp.eq.s32.totalorder %s22, 1
      %p108 = por %p106, %p107
      %p110 = scmp.ne.s32.totalorder %s95, %s109
      %p111 = scmp.eq.s32.totalorder %s22, 0
      %p112 = por %p110, %p111
      %s114 = sadd.s32 %s113, 1
      %p117 = scmp.eq.s32.totalorder %s16, 1
      %p118 = scmp.ne.s32.totalorder %s113, %s115
      %p119 = scmp.eq.s32.totalorder %s16, 0
      %p120 = por %p118, %p119
      %p121 = scmp.ne.s32.totalorder %s113, %s115
      %p122 = scmp.eq.s32.totalorder %s21, 1
      %p123 = por %p121, %p122
      %p124 = scmp.ne.s32.totalorder %s115, %s116
      %p125 = scmp.eq.s32.totalorder %s21, 0
      %p126 = por %p124, %p125
      %p127 = scmp.ne.s32.totalorder %s115, %s116
      %p128 = scmp.eq.s32.totalorder %s22, 1
      %p129 = por %p127, %p128
      %p131 = scmp.ne.s32.totalorder %s116, %s130
      %p132 = scmp.eq.s32.totalorder %s22, 0
      %p133 = por %p131, %p132
      %s135 = sadd.s32 %s134, 1
      %p138 = scmp.eq.s32.totalorder %s16, 1
      %p139 = scmp.ne.s32.totalorder %s134, %s136
      %p140 = scmp.eq.s32.totalorder %s16, 0
      %p141 = por %p139, %p140
      %p142 = scmp.ne.s32.totalorder %s134, %s136
      %p143 = scmp.eq.s32.totalorder %s21, 1
      %p144 = por %p142, %p143
      %p145 = scmp.ne.s32.totalorder %s136, %s137
      %p146 = scmp.eq.s32.totalorder %s21, 0
      %p147 = por %p145, %p146
      %p148 = scmp.ne.s32.totalorder %s136, %s137
      %p149 = scmp.eq.s32.totalorder %s22, 1
      %p150 = por %p148, %p149
      %p152 = scmp.ne.s32.totalorder %s137, %s151
      %p153 = scmp.eq.s32.totalorder %s22, 0
      %p154 = por %p152, %p153
      %s156 = sadd.s32 %s155, 1
      %p159 = scmp.eq.s32.totalorder %s16, 1
      %p160 = scmp.ne.s32.totalorder %s155, %s157
      %p161 = scmp.eq.s32.totalorder %s16, 0
      %p162 = por %p160, %p161
      %p163 = scmp.ne.s32.totalorder %s155, %s157
      %p164 = scmp.eq.s32.totalorder %s21, 1
      %p165 = por %p163, %p164
      %p166 = scmp.ne.s32.totalorder %s157, %s158
      %p167 = scmp.eq.s32.totalorder %s21, 0
      %p168 = por %p166, %p167
      %p169 = scmp.ne.s32.totalorder %s157, %s158
      %p170 = scmp.eq.s32.totalorder %s22, 1
      %p171 = por %p169, %p170
      %p173 = scmp.ne.s32.totalorder %s158, %s172
      %p174 = scmp.eq.s32.totalorder %s22, 0
      %p175 = por %p173, %p174
      %s176 = ssub.s32 %s16, %s23
      %p177 = scmp.eq.s32.totalorder %s176, 0
      %s179 = sadd.s32 %s178, 1
      %s180 = scalar_select %p177, %s178, %s179
      %p183 = pneg %p177
      %p184 = scmp.eq.s32.totalorder %s16, 1
      %p185 = por %p183, %p184
      %p186 = scmp.ne.s32.totalorder %s178, %s181
      %p187 = scmp.eq.s32.totalorder %s16, 0
      %p188 = por %p186, %p187
      %p189 = scmp.ne.s32.totalorder %s178, %s181
      %p190 = scmp.eq.s32.totalorder %s21, 1
      %p191 = por %p189, %p190
      %p192 = scmp.ne.s32.totalorder %s181, %s182
      %p193 = scmp.eq.s32.totalorder %s21, 0
      %p194 = por %p192, %p193
      %p195 = scmp.ne.s32.totalorder %s181, %s182
      %p196 = scmp.eq.s32.totalorder %s22, 1
      %p197 = por %p195, %p196
      %p199 = scmp.ne.s32.totalorder %s182, %s198
      %p200 = scmp.eq.s32.totalorder %s22, 0
      %p201 = por %p199, %p200
      %p202 = scmp.le.s32.totalorder 1, %s16
      %p203 = scmp.lt.s32.totalorder %s16, 3
      %p204 = pnand %p202, %p203
      %p205 = pneg %p204
      // Predicated region
      $region9: #{tpu_custom_call.1} parent=5 // pred_check
        _
      $region10: #{tpu_custom_call.1} parent=5 // pred_check_branch
        %207 = sbr.rel (%p204) target = $region12
      $region11: #{tpu_custom_call.1} parent=5 // pred_region
        %s208 = ssub.s32 %s16, 1
        // Predicated region
        $region13: #{tpu_custom_call.1} parent=11 // pred_check
          %p209 = pneg %p63
        $region14: #{tpu_custom_call.1} parent=11 // pred_check_branch
          %211 = sbr.rel (%p209) target = $region16
        $region15: #{tpu_custom_call.1} parent=11 // pred_region
          _
        $region16: #{tpu_custom_call.1} parent=11 // pred_fallthru
          _
        // Predicated region
        $region17: #{tpu_custom_call.1} parent=11 // pred_check
          %p212 = pneg %p84
        $region18: #{tpu_custom_call.1} parent=11 // pred_check_branch
          %214 = sbr.rel (%p212) target = $region20
        $region19: #{tpu_custom_call.1} parent=11 // pred_region
          _
        $region20: #{tpu_custom_call.1} parent=11 // pred_fallthru
          _
        // Predicated region
        $region21: #{tpu_custom_call.1} parent=11 // pred_check
          %p215 = pneg %p105
        $region22: #{tpu_custom_call.1} parent=11 // pred_check_branch
          %217 = sbr.rel (%p215) target = $region24
        $region23: #{tpu_custom_call.1} parent=11 // pred_region
          _
        $region24: #{tpu_custom_call.1} parent=11 // pred_fallthru
          _
        // Predicated region
        $region25: #{tpu_custom_call.1} parent=11 // pred_check
          %p218 = pneg %p126
        $region26: #{tpu_custom_call.1} parent=11 // pred_check_branch
          %220 = sbr.rel (%p218) target = $region28
        $region27: #{tpu_custom_call.1} parent=11 // pred_region
          _
        $region28: #{tpu_custom_call.1} parent=11 // pred_fallthru
          _
        // Predicated region
        $region29: #{tpu_custom_call.1} parent=11 // pred_check
          %p221 = pneg %p147
        $region30: #{tpu_custom_call.1} parent=11 // pred_check_branch
          %223 = sbr.rel (%p221) target = $region32
        $region31: #{tpu_custom_call.1} parent=11 // pred_region
          _
        $region32: #{tpu_custom_call.1} parent=11 // pred_fallthru
          _
        // Predicated region
        $region33: #{tpu_custom_call.1} parent=11 // pred_check
          %p224 = pneg %p168
        $region34: #{tpu_custom_call.1} parent=11 // pred_check_branch
          %226 = sbr.rel (%p224) target = $region36
        $region35: #{tpu_custom_call.1} parent=11 // pred_region
          _
        $region36: #{tpu_custom_call.1} parent=11 // pred_fallthru
          _
      $region12: #{tpu_custom_call.1} parent=5 // pred_fallthru
        _
      %p227 = scmp.lt.s32.totalorder %s16, 2
      // Predicated region
      $region37: #{tpu_custom_call.1} parent=5 // pred_check
        %p228 = pneg %p227
      $region38: #{tpu_custom_call.1} parent=5 // pred_check_branch
        %230 = sbr.rel (%p228) target = $region40
      $region39: #{tpu_custom_call.1} parent=5 // pred_region
        // Predicated region
        $region41: #{tpu_custom_call.1} parent=39 // pred_check
          %p231 = pneg %p36
        $region42: #{tpu_custom_call.1} parent=39 // pred_check_branch
          %233 = sbr.rel (%p231) target = $region44
        $region43: #{tpu_custom_call.1} parent=39 // pred_region
          %s234 = smul.u32 16, %s16
          %p235 = scmp.lt.s32.totalorder %s234, 31
          %s236 = scalar_select %p235, %s234, 31
          %s237 = smul.addr %s236, 8
          %s238 = scalar_lea.vmem %s0, %s237
          %s239 = smul.u32 16, %s16
        $region44: #{tpu_custom_call.1} parent=39 // pred_fallthru
          _
      $region40: #{tpu_custom_call.1} parent=5 // pred_fallthru
        _
      %p240 = scmp.le.s32.totalorder 1, %s16
      %p241 = scmp.lt.s32.totalorder %s16, 3
      %p242 = pnand %p240, %p241
      %p243 = pneg %p242
      // Predicated region
      $region45: #{tpu_custom_call.1} parent=5 // pred_check
        _
      $region46: #{tpu_custom_call.1} parent=5 // pred_check_branch
        %245 = sbr.rel (%p242) target = $region48
      $region47: #{tpu_custom_call.1} parent=5 // pred_region
        %s246 = ssub.s32 %s16, 1
        %s247 = smul.u32 16, %s21
        %p248 = scmp.lt.s32.totalorder %s247, 31
        %s249 = scalar_select %p248, %s247, 31
        %s250 = smul.addr %s249, 8
        %s251 = scalar_lea.vmem %s0, %s250
        %p252 = pneg %p42
        %p253 = pneg %p39
        %p254 = pneg %p63
        %p255 = pneg %p60
        %p256 = pneg %p84
        %p257 = pneg %p81
        %p258 = pneg %p105
        %p259 = pneg %p102
        %p260 = pneg %p126
        %p261 = pneg %p123
        %p262 = pneg %p147
        %p263 = pneg %p144
        %p264 = pneg %p168
        %p265 = pneg %p165
        %p266 = pneg %p194
        %p267 = pneg %p191
        %s268 = sand.u32 %s181, 1
        %s269 = scalar_lea.sflag [#allocation3], %s268
        %s270 = sand.u32 %s181, 1
        %s271 = smul.addr %s270, 128
        %s272 = scalar_lea.vmem [#allocation2], %s271
        %s273 = smul.u32 16, %s21
        %p274 = scmp.lt.s32.totalorder %s273, 31
        %s275 = scalar_select %p274, %s273, 31
        %s276 = smul.addr %s275, 8
        %s277 = scalar_lea.vmem %s0, %s276
        %s278 = smul.u32 16, %s21
        %s279 = smul.u32 16, %s21
        %v280 = vld [vmem:[%s277] sm:$0xff]
        %v281 = vld [vmem:[%s277 + $0x8] sm:$0xff]
        %v282 = vld [vmem:[%s277 + $0x10] sm:$0xff]
        %v283 = vld [vmem:[%s277 + $0x18] sm:$0xff]
        %v284 = vld [vmem:[%s277 + $0x20] sm:$0xff]
        %v285 = vld [vmem:[%s277 + $0x28] sm:$0xff]
        %v286 = vld [vmem:[%s277 + $0x30] sm:$0xff]
        %v287 = vld [vmem:[%s277 + $0x38] sm:$0xff]
        %v288 = vld [vmem:[%s277 + $0x40] sm:$0xff]
        %v289 = vld [vmem:[%s277 + $0x48] sm:$0xff]
        %v290 = vld [vmem:[%s277 + $0x50] sm:$0xff]
        %v291 = vld [vmem:[%s277 + $0x58] sm:$0xff]
        %v292 = vld [vmem:[%s277 + $0x60] sm:$0xff]
        %v293 = vld [vmem:[%s277 + $0x68] sm:$0xff]
        %v294 = vld [vmem:[%s277 + $0x70] sm:$0xff]
        %v295 = vld [vmem:[%s277 + $0x78] sm:$0xff]
        %v296 = vld [vmem:[%s1] sm:$0xff]
        %v297 = vld [vmem:[%s2] sm:$0x1]
        %v299 = vlaneseq
        %v300 = vshrl.u32 %v299, 7
        %v301 = vsub.s32 0, %v300
        %v302 = vrot.slane %v297, %v301
        %vm304 = vcmask 64512
        %v306 = vsel %vm304, %v280, 0
        %v309 = vsel %vm304, %v281, 0
        %v312 = vsel %vm304, %v282, 0
        %v315 = vsel %vm304, %v283, 0
        %v318 = vsel %vm304, %v284, 0
        %v321 = vsel %vm304, %v285, 0
        %v324 = vsel %vm304, %v286, 0
        %v327 = vsel %vm304, %v287, 0
        %v330 = vsel %vm304, %v288, 0
        %v333 = vsel %vm304, %v289, 0
        %v336 = vsel %vm304, %v290, 0
        %v339 = vsel %vm304, %v291, 0
        %v342 = vsel %vm304, %v292, 0
        %v345 = vsel %vm304, %v293, 0
        %v348 = vsel %vm304, %v294, 0
        %v351 = vsel %vm304, %v295, 0
        %353 = vmatprep.subr.mxu0 0.0
        %354 = vmatpush1.msra.mxu0 %v296
        %355 = vmatprep.subr.mxu0 0.0
        %356 = vmatpush1.msra.mxu0 0.0
        %357 = vmatprep.subr.mxu0 0.0
        %358 = vmatpush1.msra.mxu0 0.0
        %359 = vmatprep.subr.mxu0 0.0
        %360 = vmatpush1.msra.mxu0 0.0
        %361 = vmatprep.subr.mxu0 0.0
        %362 = vmatpush1.msra.mxu0 0.0
        %363 = vmatprep.subr.mxu0 0.0
        %364 = vmatpush1.msra.mxu0 0.0
        %365 = vmatprep.subr.mxu0 0.0
        %366 = vmatpush1.msra.mxu0 0.0
        %367 = vmatprep.subr.mxu0 0.0
        %368 = vmatpush1.msra.mxu0 0.0
        %369 = vmatprep.subr.mxu0 0.0
        %370 = vmatpush1.msra.mxu0 0.0
        %371 = vmatprep.subr.mxu0 0.0
        %372 = vmatpush1.msra.mxu0 0.0
        %373 = vmatprep.subr.mxu0 0.0
        %374 = vmatpush1.msra.mxu0 0.0
        %375 = vmatprep.subr.mxu0 0.0
        %376 = vmatpush1.msra.mxu0 0.0
        %377 = vmatprep.subr.mxu0 0.0
        %378 = vmatpush1.msra.mxu0 0.0
        %379 = vmatprep.subr.mxu0 0.0
        %380 = vmatpush1.msra.mxu0 0.0
        %381 = vmatprep.subr.mxu0 0.0
        %382 = vmatpush1.msra.mxu0 0.0
        %383 = vmatprep.subr.mxu0 0.0
        %384 = vmatpush1.msra.mxu0 0.0
        %385 = vmatprep.subr.mxu0 0.0
        %386 = vmatpush1.msra.mxu0 0.0
        %387 = vmatprep.subr.mxu0 0.0
        %388 = vmatpush1.msra.mxu0 0.0
        %389 = vmatprep.subr.mxu0 0.0
        %390 = vmatpush1.msra.mxu0 0.0
        %391 = vmatprep.subr.mxu0 0.0
        %392 = vmatpush1.msra.mxu0 0.0
        %393 = vmatprep.subr.mxu0 0.0
        %394 = vmatpush1.msra.mxu0 0.0
        %395 = vmatprep.subr.mxu0 0.0
        %396 = vmatpush1.msra.mxu0 0.0
        %397 = vmatprep.subr.mxu0 0.0
        %398 = vmatpush1.msra.mxu0 0.0
        %399 = vmatprep.subr.mxu0 0.0
        %400 = vmatpush1.msra.mxu0 0.0
        %401 = vmatprep.subr.mxu0 0.0
        %402 = vmatpush1.msra.mxu0 0.0
        %403 = vmatprep.subr.mxu0 0.0
        %404 = vmatpush1.msra.mxu0 0.0
        %405 = vmatprep.subr.mxu0 0.0
        %406 = vmatpush1.msra.mxu0 0.0
        %407 = vmatprep.subr.mxu0 0.0
        %408 = vmatpush1.msra.mxu0 0.0
        %409 = vmatprep.subr.mxu0 0.0
        %410 = vmatpush1.msra.mxu0 0.0
        %411 = vmatprep.subr.mxu0 0.0
        %412 = vmatpush1.msra.mxu0 0.0
        %413 = vmatprep.subr.mxu0 0.0
        %414 = vmatpush1.msra.mxu0 0.0
        %415 = vmatprep.subr.mxu0 0.0
        %416 = vmatpush1.msra.mxu0 0.0
        %417 = vmatprep.mubr.f32.mxu0 0.0
        %418 = vmatmul.mubr.f32.gmra.mrb[0].mxu0 %v306
        %v419 = vpop.f32.mrb[0].mxu0
        %v420 = vadd.f32 %v302, %v419
        %v421 = vpop.f32.mrb[0].mxu0
        %422 = vmatprep.mubr.f32.mxu0 0.0
        %423 = vmatmul.mubr.f32.gmra.mrb[0].mxu0 %v309
        %v424 = vpop.f32.mrb[0].mxu0
        %v425 = vadd.f32 %v302, %v424
        %v426 = vpop.f32.mrb[0].mxu0
        %427 = vmatprep.mubr.f32.mxu0 0.0
        %428 = vmatmul.mubr.f32.gmra.mrb[0].mxu0 %v312
        %v429 = vpop.f32.mrb[0].mxu0
        %v430 = vadd.f32 %v302, %v429
        %v431 = vpop.f32.mrb[0].mxu0
        %432 = vmatprep.mubr.f32.mxu0 0.0
        %433 = vmatmul.mubr.f32.gmra.mrb[0].mxu0 %v315
        %v434 = vpop.f32.mrb[0].mxu0
        %v435 = vadd.f32 %v302, %v434
        %v436 = vpop.f32.mrb[0].mxu0
        %437 = vmatprep.mubr.f32.mxu0 0.0
        %438 = vmatmul.mubr.f32.gmra.mrb[0].mxu0 %v318
        %v439 = vpop.f32.mrb[0].mxu0
        %v440 = vadd.f32 %v302, %v439
        %v441 = vpop.f32.mrb[0].mxu0
        %442 = vmatprep.mubr.f32.mxu0 0.0
        %443 = vmatmul.mubr.f32.gmra.mrb[0].mxu0 %v321
        %v444 = vpop.f32.mrb[0].mxu0
        %v445 = vadd.f32 %v302, %v444
        %v446 = vpop.f32.mrb[0].mxu0
        %447 = vmatprep.mubr.f32.mxu0 0.0
        %448 = vmatmul.mubr.f32.gmra.mrb[0].mxu0 %v324
        %v449 = vpop.f32.mrb[0].mxu0
        %v450 = vadd.f32 %v302, %v449
        %v451 = vpop.f32.mrb[0].mxu0
        %452 = vmatprep.mubr.f32.mxu0 0.0
        %453 = vmatmul.mubr.f32.gmra.mrb[0].mxu0 %v327
        %v454 = vpop.f32.mrb[0].mxu0
        %v455 = vadd.f32 %v302, %v454
        %v456 = vpop.f32.mrb[0].mxu0
        %457 = vmatprep.mubr.f32.mxu0 0.0
        %458 = vmatmul.mubr.f32.gmra.mrb[0].mxu0 %v330
        %v459 = vpop.f32.mrb[0].mxu0
        %v460 = vadd.f32 %v302, %v459
        %v461 = vpop.f32.mrb[0].mxu0
        %462 = vmatprep.mubr.f32.mxu0 0.0
        %463 = vmatmul.mubr.f32.gmra.mrb[0].mxu0 %v333
        %v464 = vpop.f32.mrb[0].mxu0
        %v465 = vadd.f32 %v302, %v464
        %v466 = vpop.f32.mrb[0].mxu0
        %467 = vmatprep.mubr.f32.mxu0 0.0
        %468 = vmatmul.mubr.f32.gmra.mrb[0].mxu0 %v336
        %v469 = vpop.f32.mrb[0].mxu0
        %v470 = vadd.f32 %v302, %v469
        %v471 = vpop.f32.mrb[0].mxu0
        %472 = vmatprep.mubr.f32.mxu0 0.0
        %473 = vmatmul.mubr.f32.gmra.mrb[0].mxu0 %v339
        %v474 = vpop.f32.mrb[0].mxu0
        %v475 = vadd.f32 %v302, %v474
        %v476 = vpop.f32.mrb[0].mxu0
        %477 = vmatprep.mubr.f32.mxu0 0.0
        %478 = vmatmul.mubr.f32.gmra.mrb[0].mxu0 %v342
        %v479 = vpop.f32.mrb[0].mxu0
        %v480 = vadd.f32 %v302, %v479
        %v481 = vpop.f32.mrb[0].mxu0
        %482 = vmatprep.mubr.f32.mxu0 0.0
        %483 = vmatmul.mubr.f32.gmra.mrb[0].mxu0 %v345
        %v484 = vpop.f32.mrb[0].mxu0
        %v485 = vadd.f32 %v302, %v484
        %v486 = vpop.f32.mrb[0].mxu0
        %487 = vmatprep.mubr.f32.mxu0 0.0
        %488 = vmatmul.mubr.f32.gmra.mrb[0].mxu0 %v348
        %v489 = vpop.f32.mrb[0].mxu0
        %v490 = vadd.f32 %v302, %v489
        %v491 = vpop.f32.mrb[0].mxu0
        %492 = vmatprep.mubr.f32.mxu0 0.0
        %493 = vmatmul.mubr.f32.gmra.mrb[0].mxu0 %v351
        %v494 = vpop.f32.mrb[0].mxu0
        %v495 = vadd.f32 %v302, %v494
        %v496 = vpop.f32.mrb[0].mxu0
        %497 = vdwg.mxu0
        %v498 = vmax.f32 %v420, 0.0
        %v499 = vmax.f32 %v425, 0.0
        %v500 = vmax.f32 %v430, 0.0
        %v501 = vmax.f32 %v435, 0.0
        %v502 = vmax.f32 %v440, 0.0
        %v503 = vmax.f32 %v445, 0.0
        %v504 = vmax.f32 %v450, 0.0
        %v505 = vmax.f32 %v455, 0.0
        %v506 = vmax.f32 %v460, 0.0
        %v507 = vmax.f32 %v465, 0.0
        %v508 = vmax.f32 %v470, 0.0
        %v509 = vmax.f32 %v475, 0.0
        %v510 = vmax.f32 %v480, 0.0
        %v511 = vmax.f32 %v485, 0.0
        %v512 = vmax.f32 %v490, 0.0
        %v513 = vmax.f32 %v495, 0.0
        %v514 = vld [vmem:[%s3] sm:$0xff]
        %v515 = vld [vmem:[%s3 + $0x8] sm:$0xff]
        %v516 = vld [vmem:[%s3 + $0x10] sm:$0xff]
        %v517 = vld [vmem:[%s3 + $0x18] sm:$0xff]
        %v518 = vld [vmem:[%s3 + $0x20] sm:$0xff]
        %v519 = vld [vmem:[%s3 + $0x28] sm:$0xff]
        %v520 = vld [vmem:[%s3 + $0x30] sm:$0xff]
        %v521 = vld [vmem:[%s3 + $0x38] sm:$0xff]
        %v522 = vld [vmem:[%s3 + $0x40] sm:$0xff]
        %v523 = vld [vmem:[%s3 + $0x48] sm:$0xff]
        %v524 = vld [vmem:[%s3 + $0x50] sm:$0xff]
        %v525 = vld [vmem:[%s3 + $0x58] sm:$0xff]
        %v526 = vld [vmem:[%s3 + $0x60] sm:$0xff]
        %v527 = vld [vmem:[%s3 + $0x68] sm:$0xff]
        %v528 = vld [vmem:[%s3 + $0x70] sm:$0xff]
        %v529 = vld [vmem:[%s3 + $0x78] sm:$0xff]
        %v530 = vld [vmem:[%s4] sm:$0x1]
        %v532 = vlaneseq
        %v533 = vshrl.u32 %v532, 7
        %v534 = vsub.s32 0, %v533
        %v535 = vrot.slane %v530, %v534
        %537 = vmatprep.subr.mxu0 0.0
        %538 = vmatpush1.msra.mxu0 %v514
        %539 = vmatprep.subr.mxu0 0.0
        %540 = vmatpush1.msra.mxu0 %v515
        %541 = vmatprep.subr.mxu0 0.0
        %542 = vmatpush1.msra.mxu0 %v516
        %543 = vmatprep.subr.mxu0 0.0
        %544 = vmatpush1.msra.mxu0 %v517
        %545 = vmatprep.subr.mxu0 0.0
        %546 = vmatpush1.msra.mxu0 %v518
        %547 = vmatprep.subr.mxu0 0.0
        %548 = vmatpush1.msra.mxu0 %v519
        %549 = vmatprep.subr.mxu0 0.0
        %550 = vmatpush1.msra.mxu0 %v520
        %551 = vmatprep.subr.mxu0 0.0
        %552 = vmatpush1.msra.mxu0 %v521
        %553 = vmatprep.subr.mxu0 0.0
        %554 = vmatpush1.msra.mxu0 %v522
        %555 = vmatprep.subr.mxu0 0.0
        %556 = vmatpush1.msra.mxu0 %v523
        %557 = vmatprep.subr.mxu0 0.0
        %558 = vmatpush1.msra.mxu0 %v524
        %559 = vmatprep.subr.mxu0 0.0
        %560 = vmatpush1.msra.mxu0 %v525
        %561 = vmatprep.subr.mxu0 0.0
        %562 = vmatpush1.msra.mxu0 %v526
        %563 = vmatprep.subr.mxu0 0.0
        %564 = vmatpush1.msra.mxu0 %v527
        %565 = vmatprep.subr.mxu0 0.0
        %566 = vmatpush1.msra.mxu0 %v528
        %567 = vmatprep.subr.mxu0 0.0
        %568 = vmatpush1.msra.mxu0 %v529
        %569 = vmatprep.subr.mxu0 0.0
        %570 = vmatpush1.msra.mxu0 0.0
        %571 = vmatprep.subr.mxu0 0.0
        %572 = vmatpush1.msra.mxu0 0.0
        %573 = vmatprep.subr.mxu0 0.0
        %574 = vmatpush1.msra.mxu0 0.0
        %575 = vmatprep.subr.mxu0 0.0
        %576 = vmatpush1.msra.mxu0 0.0
        %577 = vmatprep.subr.mxu0 0.0
        %578 = vmatpush1.msra.mxu0 0.0
        %579 = vmatprep.subr.mxu0 0.0
        %580 = vmatpush1.msra.mxu0 0.0
        %581 = vmatprep.subr.mxu0 0.0
        %582 = vmatpush1.msra.mxu0 0.0
        %583 = vmatprep.subr.mxu0 0.0
        %584 = vmatpush1.msra.mxu0 0.0
        %585 = vmatprep.subr.mxu0 0.0
        %586 = vmatpush1.msra.mxu0 0.0
        %587 = vmatprep.subr.mxu0 0.0
        %588 = vmatpush1.msra.mxu0 0.0
        %589 = vmatprep.subr.mxu0 0.0
        %590 = vmatpush1.msra.mxu0 0.0
        %591 = vmatprep.subr.mxu0 0.0
        %592 = vmatpush1.msra.mxu0 0.0
        %593 = vmatprep.subr.mxu0 0.0
        %594 = vmatpush1.msra.mxu0 0.0
        %595 = vmatprep.subr.mxu0 0.0
        %596 = vmatpush1.msra.mxu0 0.0
        %597 = vmatprep.subr.mxu0 0.0
        %598 = vmatpush1.msra.mxu0 0.0
        %599 = vmatprep.subr.mxu0 0.0
        %600 = vmatpush1.msra.mxu0 0.0
        %601 = vmatprep.mubr.f32.mxu0 0.0
        %602 = vmatmul.mubr.f32.gmra.mrb[0].mxu0 %v498
        %v603 = vpop.f32.mrb[0].mxu0
        %v604 = vadd.f32 %v535, %v603
        %v605 = vpop.f32.mrb[0].mxu0
        %606 = vmatprep.mubr.f32.mxu0 0.0
        %607 = vmatmul.mubr.f32.gmra.mrb[0].mxu0 %v499
        %v608 = vpop.f32.mrb[0].mxu0
        %v609 = vadd.f32 %v535, %v608
        %v610 = vpop.f32.mrb[0].mxu0
        %611 = vmatprep.mubr.f32.mxu0 0.0
        %612 = vmatmul.mubr.f32.gmra.mrb[0].mxu0 %v500
        %v613 = vpop.f32.mrb[0].mxu0
        %v614 = vadd.f32 %v535, %v613
        %v615 = vpop.f32.mrb[0].mxu0
        %616 = vmatprep.mubr.f32.mxu0 0.0
        %617 = vmatmul.mubr.f32.gmra.mrb[0].mxu0 %v501
        %v618 = vpop.f32.mrb[0].mxu0
        %v619 = vadd.f32 %v535, %v618
        %v620 = vpop.f32.mrb[0].mxu0
        %621 = vmatprep.mubr.f32.mxu0 0.0
        %622 = vmatmul.mubr.f32.gmra.mrb[0].mxu0 %v502
        %v623 = vpop.f32.mrb[0].mxu0
        %v624 = vadd.f32 %v535, %v623
        %v625 = vpop.f32.mrb[0].mxu0
        %626 = vmatprep.mubr.f32.mxu0 0.0
        %627 = vmatmul.mubr.f32.gmra.mrb[0].mxu0 %v503
        %v628 = vpop.f32.mrb[0].mxu0
        %v629 = vadd.f32 %v535, %v628
        %v630 = vpop.f32.mrb[0].mxu0
        %631 = vmatprep.mubr.f32.mxu0 0.0
        %632 = vmatmul.mubr.f32.gmra.mrb[0].mxu0 %v504
        %v633 = vpop.f32.mrb[0].mxu0
        %v634 = vadd.f32 %v535, %v633
        %v635 = vpop.f32.mrb[0].mxu0
        %636 = vmatprep.mubr.f32.mxu0 0.0
        %637 = vmatmul.mubr.f32.gmra.mrb[0].mxu0 %v505
        %v638 = vpop.f32.mrb[0].mxu0
        %v639 = vadd.f32 %v535, %v638
        %v640 = vpop.f32.mrb[0].mxu0
        %641 = vmatprep.mubr.f32.mxu0 0.0
        %642 = vmatmul.mubr.f32.gmra.mrb[0].mxu0 %v506
        %v643 = vpop.f32.mrb[0].mxu0
        %v644 = vadd.f32 %v535, %v643
        %v645 = vpop.f32.mrb[0].mxu0
        %646 = vmatprep.mubr.f32.mxu0 0.0
        %647 = vmatmul.mubr.f32.gmra.mrb[0].mxu0 %v507
        %v648 = vpop.f32.mrb[0].mxu0
        %v649 = vadd.f32 %v535, %v648
        %v650 = vpop.f32.mrb[0].mxu0
        %651 = vmatprep.mubr.f32.mxu0 0.0
        %652 = vmatmul.mubr.f32.gmra.mrb[0].mxu0 %v508
        %v653 = vpop.f32.mrb[0].mxu0
        %v654 = vadd.f32 %v535, %v653
        %v655 = vpop.f32.mrb[0].mxu0
        %656 = vmatprep.mubr.f32.mxu0 0.0
        %657 = vmatmul.mubr.f32.gmra.mrb[0].mxu0 %v509
        %v658 = vpop.f32.mrb[0].mxu0
        %v659 = vadd.f32 %v535, %v658
        %v660 = vpop.f32.mrb[0].mxu0
        %661 = vmatprep.mubr.f32.mxu0 0.0
        %662 = vmatmul.mubr.f32.gmra.mrb[0].mxu0 %v510
        %v663 = vpop.f32.mrb[0].mxu0
        %v664 = vadd.f32 %v535, %v663
        %v665 = vpop.f32.mrb[0].mxu0
        %666 = vmatprep.mubr.f32.mxu0 0.0
        %667 = vmatmul.mubr.f32.gmra.mrb[0].mxu0 %v511
        %v668 = vpop.f32.mrb[0].mxu0
        %v669 = vadd.f32 %v535, %v668
        %v670 = vpop.f32.mrb[0].mxu0
        %671 = vmatprep.mubr.f32.mxu0 0.0
        %672 = vmatmul.mubr.f32.gmra.mrb[0].mxu0 %v512
        %v673 = vpop.f32.mrb[0].mxu0
        %v674 = vadd.f32 %v535, %v673
        %v675 = vpop.f32.mrb[0].mxu0
        %676 = vmatprep.mubr.f32.mxu0 0.0
        %677 = vmatmul.mubr.f32.gmra.mrb[0].mxu0 %v513
        %v678 = vpop.f32.mrb[0].mxu0
        %v679 = vadd.f32 %v535, %v678
        %v680 = vpop.f32.mrb[0].mxu0
        %681 = vdwg.mxu0
        %v682 = vmax.f32 %v604, 0.0
        %v683 = vmax.f32 %v609, 0.0
        %v684 = vmax.f32 %v614, 0.0
        %v685 = vmax.f32 %v619, 0.0
        %v686 = vmax.f32 %v624, 0.0
        %v687 = vmax.f32 %v629, 0.0
        %v688 = vmax.f32 %v634, 0.0
        %v689 = vmax.f32 %v639, 0.0
        %v690 = vmax.f32 %v644, 0.0
        %v691 = vmax.f32 %v649, 0.0
        %v692 = vmax.f32 %v654, 0.0
        %v693 = vmax.f32 %v659, 0.0
        %v694 = vmax.f32 %v664, 0.0
        %v695 = vmax.f32 %v669, 0.0
        %v696 = vmax.f32 %v674, 0.0
        %v697 = vmax.f32 %v679, 0.0
        %v698 = vld [vmem:[%s5] sm:$0xff]
        %v699 = vld [vmem:[%s5 + $0x8] sm:$0xff]
        %v700 = vld [vmem:[%s5 + $0x10] sm:$0xff]
        %v701 = vld [vmem:[%s5 + $0x18] sm:$0xff]
        %v702 = vld [vmem:[%s5 + $0x20] sm:$0xff]
        %v703 = vld [vmem:[%s5 + $0x28] sm:$0xff]
        %v704 = vld [vmem:[%s5 + $0x30] sm:$0xff]
        %v705 = vld [vmem:[%s5 + $0x38] sm:$0xff]
        %v706 = vld [vmem:[%s5 + $0x40] sm:$0xff]
        %v707 = vld [vmem:[%s5 + $0x48] sm:$0xff]
        %v708 = vld [vmem:[%s5 + $0x50] sm:$0xff]
        %v709 = vld [vmem:[%s5 + $0x58] sm:$0xff]
        %v710 = vld [vmem:[%s5 + $0x60] sm:$0xff]
        %v711 = vld [vmem:[%s5 + $0x68] sm:$0xff]
        %v712 = vld [vmem:[%s5 + $0x70] sm:$0xff]
        %v713 = vld [vmem:[%s5 + $0x78] sm:$0xff]
        %v714 = vld [vmem:[%s6] sm:$0x1]
        %v716 = vlaneseq
        %v717 = vshrl.u32 %v716, 7
        %v718 = vsub.s32 0, %v717
        %v719 = vrot.slane %v714, %v718
        %721 = vmatprep.subr.mxu0 0.0
        %722 = vmatpush1.msra.mxu0 %v698
        %723 = vmatprep.subr.mxu0 0.0
        %724 = vmatpush1.msra.mxu0 %v699
        %725 = vmatprep.subr.mxu0 0.0
        %726 = vmatpush1.msra.mxu0 %v700
        %727 = vmatprep.subr.mxu0 0.0
        %728 = vmatpush1.msra.mxu0 %v701
        %729 = vmatprep.subr.mxu0 0.0
        %730 = vmatpush1.msra.mxu0 %v702
        %731 = vmatprep.subr.mxu0 0.0
        %732 = vmatpush1.msra.mxu0 %v703
        %733 = vmatprep.subr.mxu0 0.0
        %734 = vmatpush1.msra.mxu0 %v704
        %735 = vmatprep.subr.mxu0 0.0
        %736 = vmatpush1.msra.mxu0 %v705
        %737 = vmatprep.subr.mxu0 0.0
        %738 = vmatpush1.msra.mxu0 %v706
        %739 = vmatprep.subr.mxu0 0.0
        %740 = vmatpush1.msra.mxu0 %v707
        %741 = vmatprep.subr.mxu0 0.0
        %742 = vmatpush1.msra.mxu0 %v708
        %743 = vmatprep.subr.mxu0 0.0
        %744 = vmatpush1.msra.mxu0 %v709
        %745 = vmatprep.subr.mxu0 0.0
        %746 = vmatpush1.msra.mxu0 %v710
        %747 = vmatprep.subr.mxu0 0.0
        %748 = vmatpush1.msra.mxu0 %v711
        %749 = vmatprep.subr.mxu0 0.0
        %750 = vmatpush1.msra.mxu0 %v712
        %751 = vmatprep.subr.mxu0 0.0
        %752 = vmatpush1.msra.mxu0 %v713
        %753 = vmatprep.subr.mxu0 0.0
        %754 = vmatpush1.msra.mxu0 0.0
        %755 = vmatprep.subr.mxu0 0.0
        %756 = vmatpush1.msra.mxu0 0.0
        %757 = vmatprep.subr.mxu0 0.0
        %758 = vmatpush1.msra.mxu0 0.0
        %759 = vmatprep.subr.mxu0 0.0
        %760 = vmatpush1.msra.mxu0 0.0
        %761 = vmatprep.subr.mxu0 0.0
        %762 = vmatpush1.msra.mxu0 0.0
        %763 = vmatprep.subr.mxu0 0.0
        %764 = vmatpush1.msra.mxu0 0.0
        %765 = vmatprep.subr.mxu0 0.0
        %766 = vmatpush1.msra.mxu0 0.0
        %767 = vmatprep.subr.mxu0 0.0
        %768 = vmatpush1.msra.mxu0 0.0
        %769 = vmatprep.subr.mxu0 0.0
        %770 = vmatpush1.msra.mxu0 0.0
        %771 = vmatprep.subr.mxu0 0.0
        %772 = vmatpush1.msra.mxu0 0.0
        %773 = vmatprep.subr.mxu0 0.0
        %774 = vmatpush1.msra.mxu0 0.0
        %775 = vmatprep.subr.mxu0 0.0
        %776 = vmatpush1.msra.mxu0 0.0
        %777 = vmatprep.subr.mxu0 0.0
        %778 = vmatpush1.msra.mxu0 0.0
        %779 = vmatprep.subr.mxu0 0.0
        %780 = vmatpush1.msra.mxu0 0.0
        %781 = vmatprep.subr.mxu0 0.0
        %782 = vmatpush1.msra.mxu0 0.0
        %783 = vmatprep.subr.mxu0 0.0
        %784 = vmatpush1.msra.mxu0 0.0
        %785 = vmatprep.mubr.f32.mxu0 0.0
        %786 = vmatmul.mubr.f32.gmra.mrb[0].mxu0 %v682
        %v787 = vpop.f32.mrb[0].mxu0
        %v788 = vadd.f32 %v719, %v787
        %v789 = vpop.f32.mrb[0].mxu0
        %790 = vmatprep.mubr.f32.mxu0 0.0
        %791 = vmatmul.mubr.f32.gmra.mrb[0].mxu0 %v683
        %v792 = vpop.f32.mrb[0].mxu0
        %v793 = vadd.f32 %v719, %v792
        %v794 = vpop.f32.mrb[0].mxu0
        %795 = vmatprep.mubr.f32.mxu0 0.0
        %796 = vmatmul.mubr.f32.gmra.mrb[0].mxu0 %v684
        %v797 = vpop.f32.mrb[0].mxu0
        %v798 = vadd.f32 %v719, %v797
        %v799 = vpop.f32.mrb[0].mxu0
        %800 = vmatprep.mubr.f32.mxu0 0.0
        %801 = vmatmul.mubr.f32.gmra.mrb[0].mxu0 %v685
        %v802 = vpop.f32.mrb[0].mxu0
        %v803 = vadd.f32 %v719, %v802
        %v804 = vpop.f32.mrb[0].mxu0
        %805 = vmatprep.mubr.f32.mxu0 0.0
        %806 = vmatmul.mubr.f32.gmra.mrb[0].mxu0 %v686
        %v807 = vpop.f32.mrb[0].mxu0
        %v808 = vadd.f32 %v719, %v807
        %v809 = vpop.f32.mrb[0].mxu0
        %810 = vmatprep.mubr.f32.mxu0 0.0
        %811 = vmatmul.mubr.f32.gmra.mrb[0].mxu0 %v687
        %v812 = vpop.f32.mrb[0].mxu0
        %v813 = vadd.f32 %v719, %v812
        %v814 = vpop.f32.mrb[0].mxu0
        %815 = vmatprep.mubr.f32.mxu0 0.0
        %816 = vmatmul.mubr.f32.gmra.mrb[0].mxu0 %v688
        %v817 = vpop.f32.mrb[0].mxu0
        %v818 = vadd.f32 %v719, %v817
        %v819 = vpop.f32.mrb[0].mxu0
        %820 = vmatprep.mubr.f32.mxu0 0.0
        %821 = vmatmul.mubr.f32.gmra.mrb[0].mxu0 %v689
        %v822 = vpop.f32.mrb[0].mxu0
        %v823 = vadd.f32 %v719, %v822
        %v824 = vpop.f32.mrb[0].mxu0
        %825 = vmatprep.mubr.f32.mxu0 0.0
        %826 = vmatmul.mubr.f32.gmra.mrb[0].mxu0 %v690
        %v827 = vpop.f32.mrb[0].mxu0
        %v828 = vadd.f32 %v719, %v827
        %v829 = vpop.f32.mrb[0].mxu0
        %830 = vmatprep.mubr.f32.mxu0 0.0
        %831 = vmatmul.mubr.f32.gmra.mrb[0].mxu0 %v691
        %v832 = vpop.f32.mrb[0].mxu0
        %v833 = vadd.f32 %v719, %v832
        %v834 = vpop.f32.mrb[0].mxu0
        %835 = vmatprep.mubr.f32.mxu0 0.0
        %836 = vmatmul.mubr.f32.gmra.mrb[0].mxu0 %v692
        %v837 = vpop.f32.mrb[0].mxu0
        %v838 = vadd.f32 %v719, %v837
        %v839 = vpop.f32.mrb[0].mxu0
        %840 = vmatprep.mubr.f32.mxu0 0.0
        %841 = vmatmul.mubr.f32.gmra.mrb[0].mxu0 %v693
        %v842 = vpop.f32.mrb[0].mxu0
        %v843 = vadd.f32 %v719, %v842
        %v844 = vpop.f32.mrb[0].mxu0
        %845 = vmatprep.mubr.f32.mxu0 0.0
        %846 = vmatmul.mubr.f32.gmra.mrb[0].mxu0 %v694
        %v847 = vpop.f32.mrb[0].mxu0
        %v848 = vadd.f32 %v719, %v847
        %v849 = vpop.f32.mrb[0].mxu0
        %850 = vmatprep.mubr.f32.mxu0 0.0
        %851 = vmatmul.mubr.f32.gmra.mrb[0].mxu0 %v695
        %v852 = vpop.f32.mrb[0].mxu0
        %v853 = vadd.f32 %v719, %v852
        %v854 = vpop.f32.mrb[0].mxu0
        %855 = vmatprep.mubr.f32.mxu0 0.0
        %856 = vmatmul.mubr.f32.gmra.mrb[0].mxu0 %v696
        %v857 = vpop.f32.mrb[0].mxu0
        %v858 = vadd.f32 %v719, %v857
        %v859 = vpop.f32.mrb[0].mxu0
        %860 = vmatprep.mubr.f32.mxu0 0.0
        %861 = vmatmul.mubr.f32.gmra.mrb[0].mxu0 %v697
        %v862 = vpop.f32.mrb[0].mxu0
        %v863 = vadd.f32 %v719, %v862
        %v864 = vpop.f32.mrb[0].mxu0
        %865 = vdwg.mxu0
        %v866 = vmax.f32 %v788, 0.0
        %v867 = vmax.f32 %v793, 0.0
        %v868 = vmax.f32 %v798, 0.0
        %v869 = vmax.f32 %v803, 0.0
        %v870 = vmax.f32 %v808, 0.0
        %v871 = vmax.f32 %v813, 0.0
        %v872 = vmax.f32 %v818, 0.0
        %v873 = vmax.f32 %v823, 0.0
        %v874 = vmax.f32 %v828, 0.0
        %v875 = vmax.f32 %v833, 0.0
        %v876 = vmax.f32 %v838, 0.0
        %v877 = vmax.f32 %v843, 0.0
        %v878 = vmax.f32 %v848, 0.0
        %v879 = vmax.f32 %v853, 0.0
        %v880 = vmax.f32 %v858, 0.0
        %v881 = vmax.f32 %v863, 0.0
        %v882 = vand.u32 2147483647, %v788
        %v883 = vand.u32 2147483647, %v793
        %v884 = vand.u32 2147483647, %v798
        %v885 = vand.u32 2147483647, %v803
        %v886 = vand.u32 2147483647, %v808
        %v887 = vand.u32 2147483647, %v813
        %v888 = vand.u32 2147483647, %v818
        %v889 = vand.u32 2147483647, %v823
        %v890 = vand.u32 2147483647, %v828
        %v891 = vand.u32 2147483647, %v833
        %v892 = vand.u32 2147483647, %v838
        %v893 = vand.u32 2147483647, %v843
        %v894 = vand.u32 2147483647, %v848
        %v895 = vand.u32 2147483647, %v853
        %v896 = vand.u32 2147483647, %v858
        %v897 = vand.u32 2147483647, %v863
        %v898 = vsub.f32 0.0, %v882
        %v899 = vsub.f32 0.0, %v883
        %v900 = vsub.f32 0.0, %v884
        %v901 = vsub.f32 0.0, %v885
        %v902 = vsub.f32 0.0, %v886
        %v903 = vsub.f32 0.0, %v887
        %v904 = vsub.f32 0.0, %v888
        %v905 = vsub.f32 0.0, %v889
        %v906 = vsub.f32 0.0, %v890
        %v907 = vsub.f32 0.0, %v891
        %v908 = vsub.f32 0.0, %v892
        %v909 = vsub.f32 0.0, %v893
        %v910 = vsub.f32 0.0, %v894
        %v911 = vsub.f32 0.0, %v895
        %v912 = vsub.f32 0.0, %v896
        %v913 = vsub.f32 0.0, %v897
        %v914 = vmul.f32 %v898, 1.442695
        %v915 = vpow.pop %v914
        %v916 = vmul.f32 %v899, 1.442695
        %v917 = vpow.pop %v916
        %v918 = vmul.f32 %v900, 1.442695
        %v919 = vpow.pop %v918
        %v920 = vmul.f32 %v901, 1.442695
        %v921 = vpow.pop %v920
        %v922 = vmul.f32 %v902, 1.442695
        %v923 = vpow.pop %v922
        %v924 = vmul.f32 %v903, 1.442695
        %v925 = vpow.pop %v924
        %v926 = vmul.f32 %v904, 1.442695
        %v927 = vpow.pop %v926
        %v928 = vmul.f32 %v905, 1.442695
        %v929 = vpow.pop %v928
        %v930 = vmul.f32 %v906, 1.442695
        %v931 = vpow.pop %v930
        %v932 = vmul.f32 %v907, 1.442695
        %v933 = vpow.pop %v932
        %v934 = vmul.f32 %v908, 1.442695
        %v935 = vpow.pop %v934
        %v936 = vmul.f32 %v909, 1.442695
        %v937 = vpow.pop %v936
        %v938 = vmul.f32 %v910, 1.442695
        %v939 = vpow.pop %v938
        %v940 = vmul.f32 %v911, 1.442695
        %v941 = vpow.pop %v940
        %v942 = vmul.f32 %v912, 1.442695
        %v943 = vpow.pop %v942
        %v944 = vmul.f32 %v913, 1.442695
        %v945 = vpow.pop %v944
        %v946 = vadd.f32 %v915, 1.0
        %v947 = vlog2.pop %v946
        %v948 = vmul.f32 %v947, 0.6931472
        %v949 = vmul.f32 -0.5, %v915
        %v950 = vadd.f32 %v949, 1.0
        %v951 = vmul.f32 %v950, %v915
        %v952 = vand.u32 2147483647, %v915
        %vm953 = vcmp.lt.f32.partialorder %v952, 0.0004427343
        %v954 = vsel %vm953, %v951, %v948
        %v955 = vadd.f32 %v917, 1.0
        %v956 = vlog2.pop %v955
        %v957 = vmul.f32 %v956, 0.6931472
        %v958 = vmul.f32 -0.5, %v917
        %v959 = vadd.f32 %v958, 1.0
        %v960 = vmul.f32 %v959, %v917
        %v961 = vand.u32 2147483647, %v917
        %vm962 = vcmp.lt.f32.partialorder %v961, 0.0004427343
        %v963 = vsel %vm962, %v960, %v957
        %v964 = vadd.f32 %v919, 1.0
        %v965 = vlog2.pop %v964
        %v966 = vmul.f32 %v965, 0.6931472
        %v967 = vmul.f32 -0.5, %v919
        %v968 = vadd.f32 %v967, 1.0
        %v969 = vmul.f32 %v968, %v919
        %v970 = vand.u32 2147483647, %v919
        %vm971 = vcmp.lt.f32.partialorder %v970, 0.0004427343
        %v972 = vsel %vm971, %v969, %v966
        %v973 = vadd.f32 %v921, 1.0
        %v974 = vlog2.pop %v973
        %v975 = vmul.f32 %v974, 0.6931472
        %v976 = vmul.f32 -0.5, %v921
        %v977 = vadd.f32 %v976, 1.0
        %v978 = vmul.f32 %v977, %v921
        %v979 = vand.u32 2147483647, %v921
        %vm980 = vcmp.lt.f32.partialorder %v979, 0.0004427343
        %v981 = vsel %vm980, %v978, %v975
        %v982 = vadd.f32 %v923, 1.0
        %v983 = vlog2.pop %v982
        %v984 = vmul.f32 %v983, 0.6931472
        %v985 = vmul.f32 -0.5, %v923
        %v986 = vadd.f32 %v985, 1.0
        %v987 = vmul.f32 %v986, %v923
        %v988 = vand.u32 2147483647, %v923
        %vm989 = vcmp.lt.f32.partialorder %v988, 0.0004427343
        %v990 = vsel %vm989, %v987, %v984
        %v991 = vadd.f32 %v925, 1.0
        %v992 = vlog2.pop %v991
        %v993 = vmul.f32 %v992, 0.6931472
        %v994 = vmul.f32 -0.5, %v925
        %v995 = vadd.f32 %v994, 1.0
        %v996 = vmul.f32 %v995, %v925
        %v997 = vand.u32 2147483647, %v925
        %vm998 = vcmp.lt.f32.partialorder %v997, 0.0004427343
        %v999 = vsel %vm998, %v996, %v993
        %v1000 = vadd.f32 %v927, 1.0
        %v1001 = vlog2.pop %v1000
        %v1002 = vmul.f32 %v1001, 0.6931472
        %v1003 = vmul.f32 -0.5, %v927
        %v1004 = vadd.f32 %v1003, 1.0
        %v1005 = vmul.f32 %v1004, %v927
        %v1006 = vand.u32 2147483647, %v927
        %vm1007 = vcmp.lt.f32.partialorder %v1006, 0.0004427343
        %v1008 = vsel %vm1007, %v1005, %v1002
        %v1009 = vadd.f32 %v929, 1.0
        %v1010 = vlog2.pop %v1009
        %v1011 = vmul.f32 %v1010, 0.6931472
        %v1012 = vmul.f32 -0.5, %v929
        %v1013 = vadd.f32 %v1012, 1.0
        %v1014 = vmul.f32 %v1013, %v929
        %v1015 = vand.u32 2147483647, %v929
        %vm1016 = vcmp.lt.f32.partialorder %v1015, 0.0004427343
        %v1017 = vsel %vm1016, %v1014, %v1011
        %v1018 = vadd.f32 %v931, 1.0
        %v1019 = vlog2.pop %v1018
        %v1020 = vmul.f32 %v1019, 0.6931472
        %v1021 = vmul.f32 -0.5, %v931
        %v1022 = vadd.f32 %v1021, 1.0
        %v1023 = vmul.f32 %v1022, %v931
        %v1024 = vand.u32 2147483647, %v931
        %vm1025 = vcmp.lt.f32.partialorder %v1024, 0.0004427343
        %v1026 = vsel %vm1025, %v1023, %v1020
        %v1027 = vadd.f32 %v933, 1.0
        %v1028 = vlog2.pop %v1027
        %v1029 = vmul.f32 %v1028, 0.6931472
        %v1030 = vmul.f32 -0.5, %v933
        %v1031 = vadd.f32 %v1030, 1.0
        %v1032 = vmul.f32 %v1031, %v933
        %v1033 = vand.u32 2147483647, %v933
        %vm1034 = vcmp.lt.f32.partialorder %v1033, 0.0004427343
        %v1035 = vsel %vm1034, %v1032, %v1029
        %v1036 = vadd.f32 %v935, 1.0
        %v1037 = vlog2.pop %v1036
        %v1038 = vmul.f32 %v1037, 0.6931472
        %v1039 = vmul.f32 -0.5, %v935
        %v1040 = vadd.f32 %v1039, 1.0
        %v1041 = vmul.f32 %v1040, %v935
        %v1042 = vand.u32 2147483647, %v935
        %vm1043 = vcmp.lt.f32.partialorder %v1042, 0.0004427343
        %v1044 = vsel %vm1043, %v1041, %v1038
        %v1045 = vadd.f32 %v937, 1.0
        %v1046 = vlog2.pop %v1045
        %v1047 = vmul.f32 %v1046, 0.6931472
        %v1048 = vmul.f32 -0.5, %v937
        %v1049 = vadd.f32 %v1048, 1.0
        %v1050 = vmul.f32 %v1049, %v937
        %v1051 = vand.u32 2147483647, %v937
        %vm1052 = vcmp.lt.f32.partialorder %v1051, 0.0004427343
        %v1053 = vsel %vm1052, %v1050, %v1047
        %v1054 = vadd.f32 %v939, 1.0
        %v1055 = vlog2.pop %v1054
        %v1056 = vmul.f32 %v1055, 0.6931472
        %v1057 = vmul.f32 -0.5, %v939
        %v1058 = vadd.f32 %v1057, 1.0
        %v1059 = vmul.f32 %v1058, %v939
        %v1060 = vand.u32 2147483647, %v939
        %vm1061 = vcmp.lt.f32.partialorder %v1060, 0.0004427343
        %v1062 = vsel %vm1061, %v1059, %v1056
        %v1063 = vadd.f32 %v941, 1.0
        %v1064 = vlog2.pop %v1063
        %v1065 = vmul.f32 %v1064, 0.6931472
        %v1066 = vmul.f32 -0.5, %v941
        %v1067 = vadd.f32 %v1066, 1.0
        %v1068 = vmul.f32 %v1067, %v941
        %v1069 = vand.u32 2147483647, %v941
        %vm1070 = vcmp.lt.f32.partialorder %v1069, 0.0004427343
        %v1071 = vsel %vm1070, %v1068, %v1065
        %v1072 = vadd.f32 %v943, 1.0
        %v1073 = vlog2.pop %v1072
        %v1074 = vmul.f32 %v1073, 0.6931472
        %v1075 = vmul.f32 -0.5, %v943
        %v1076 = vadd.f32 %v1075, 1.0
        %v1077 = vmul.f32 %v1076, %v943
        %v1078 = vand.u32 2147483647, %v943
        %vm1079 = vcmp.lt.f32.partialorder %v1078, 0.0004427343
        %v1080 = vsel %vm1079, %v1077, %v1074
        %v1081 = vadd.f32 %v945, 1.0
        %v1082 = vlog2.pop %v1081
        %v1083 = vmul.f32 %v1082, 0.6931472
        %v1084 = vmul.f32 -0.5, %v945
        %v1085 = vadd.f32 %v1084, 1.0
        %v1086 = vmul.f32 %v1085, %v945
        %v1087 = vand.u32 2147483647, %v945
        %vm1088 = vcmp.lt.f32.partialorder %v1087, 0.0004427343
        %v1089 = vsel %vm1088, %v1086, %v1083
        %v1090 = vadd.f32 %v866, %v954
        %v1091 = vadd.f32 %v867, %v963
        %v1092 = vadd.f32 %v868, %v972
        %v1093 = vadd.f32 %v869, %v981
        %v1094 = vadd.f32 %v870, %v990
        %v1095 = vadd.f32 %v871, %v999
        %v1096 = vadd.f32 %v872, %v1008
        %v1097 = vadd.f32 %v873, %v1017
        %v1098 = vadd.f32 %v874, %v1026
        %v1099 = vadd.f32 %v875, %v1035
        %v1100 = vadd.f32 %v876, %v1044
        %v1101 = vadd.f32 %v877, %v1053
        %v1102 = vadd.f32 %v878, %v1062
        %v1103 = vadd.f32 %v879, %v1071
        %v1104 = vadd.f32 %v880, %v1080
        %v1105 = vadd.f32 %v881, %v1089
        %v1106 = vadd.f32 %v1090, 1.0
        %v1107 = vadd.f32 %v1091, 1.0
        %v1108 = vadd.f32 %v1092, 1.0
        %v1109 = vadd.f32 %v1093, 1.0
        %v1110 = vadd.f32 %v1094, 1.0
        %v1111 = vadd.f32 %v1095, 1.0
        %v1112 = vadd.f32 %v1096, 1.0
        %v1113 = vadd.f32 %v1097, 1.0
        %v1114 = vadd.f32 %v1098, 1.0
        %v1115 = vadd.f32 %v1099, 1.0
        %v1116 = vadd.f32 %v1100, 1.0
        %v1117 = vadd.f32 %v1101, 1.0
        %v1118 = vadd.f32 %v1102, 1.0
        %v1119 = vadd.f32 %v1103, 1.0
        %v1120 = vadd.f32 %v1104, 1.0
        %v1121 = vadd.f32 %v1105, 1.0
        %v1122 = vlaneseq
        %v1123 = vand.u32 %v1122, 127
        %vm1124 = vcmp.ge.s32.totalorder %v1123, 8
        %vm1125 = vcmp.lt.s32.totalorder %v1123, 10
        %vm1126 = vmand %vm1124, %vm1125
        %v1127 = vsel %vm1126, %v1106, %v788
        %v1128 = vsel %vm1126, %v1107, %v793
        %v1129 = vsel %vm1126, %v1108, %v798
        %v1130 = vsel %vm1126, %v1109, %v803
        %v1131 = vsel %vm1126, %v1110, %v808
        %v1132 = vsel %vm1126, %v1111, %v813
        %v1133 = vsel %vm1126, %v1112, %v818
        %v1134 = vsel %vm1126, %v1113, %v823
        %v1135 = vsel %vm1126, %v1114, %v828
        %v1136 = vsel %vm1126, %v1115, %v833
        %v1137 = vsel %vm1126, %v1116, %v838
        %v1138 = vsel %vm1126, %v1117, %v843
        %v1139 = vsel %vm1126, %v1118, %v848
        %v1140 = vsel %vm1126, %v1119, %v853
        %v1141 = vsel %vm1126, %v1120, %v858
        %v1142 = vsel %vm1126, %v1121, %v863
        %1143 = vst [vmem:[%s272] sm:$0xff] %v1127
        %1144 = vst [vmem:[%s272 + $0x8] sm:$0xff] %v1128
        %1145 = vst [vmem:[%s272 + $0x10] sm:$0xff] %v1129
        %1146 = vst [vmem:[%s272 + $0x18] sm:$0xff] %v1130
        %1147 = vst [vmem:[%s272 + $0x20] sm:$0xff] %v1131
        %1148 = vst [vmem:[%s272 + $0x28] sm:$0xff] %v1132
        %1149 = vst [vmem:[%s272 + $0x30] sm:$0xff] %v1133
        %1150 = vst [vmem:[%s272 + $0x38] sm:$0xff] %v1134
        %1151 = vst [vmem:[%s272 + $0x40] sm:$0xff] %v1135
        %1152 = vst [vmem:[%s272 + $0x48] sm:$0xff] %v1136
        %1153 = vst [vmem:[%s272 + $0x50] sm:$0xff] %v1137
        %1154 = vst [vmem:[%s272 + $0x58] sm:$0xff] %v1138
        %1155 = vst [vmem:[%s272 + $0x60] sm:$0xff] %v1139
        %1156 = vst [vmem:[%s272 + $0x68] sm:$0xff] %v1140
        %1157 = vst [vmem:[%s272 + $0x70] sm:$0xff] %v1141
        %1158 = vst [vmem:[%s272 + $0x78] sm:$0xff] %v1142
        %s1159 = sand.u32 %s181, 1
        %s1160 = scalar_lea.sflag [#allocation3], %s1159
        %s1161 = sand.u32 %s181, 1
        %s1162 = smul.addr %s1161, 128
        %s1163 = scalar_lea.vmem [#allocation2], %s1162
        // Predicated region
        $region49: #{tpu_custom_call.1} parent=47 // pred_check
          %p1164 = pneg %p191
        $region50: #{tpu_custom_call.1} parent=47 // pred_check_branch
          %1166 = sbr.rel (%p1164) target = $region52
        $region51: #{tpu_custom_call.1} parent=47 // pred_region
          %s1167 = smul.u32 16, %s21
          %s1169 = ssub.s32 2048, 2048
          %1170 = vsyncadd %s1160, %s1169
          %s1171 = smul.addr %s1167, 128
          %s1172 = scalar_lea.hbm %s7, %s1171
          %s1173 = sshll.u32 %s1163, 4
          %s1174 = int_to_ptr.vmem [resolvable:$true] %s1173
          %1179 = dma.vmem_to_hbm [thread:$0]  %s1174, 2048, %s1172, %s1160, 128, 128, 8
        $region52: #{tpu_custom_call.1} parent=47 // pred_fallthru
          _
      $region48: #{tpu_custom_call.1} parent=5 // pred_fallthru
        _
      %p1180 = scmp.le.s32.totalorder 2, %s16
      // Predicated region
      $region53: #{tpu_custom_call.1} parent=5 // pred_check
        %p1181 = pneg %p1180
      $region54: #{tpu_custom_call.1} parent=5 // pred_check_branch
        %1183 = sbr.rel (%p1181) target = $region56
      $region55: #{tpu_custom_call.1} parent=5 // pred_region
        %s1184 = ssub.s32 %s16, 2
        // Predicated region
        $region57: #{tpu_custom_call.1} parent=55 // pred_check
          %p1185 = pneg %p197
        $region58: #{tpu_custom_call.1} parent=55 // pred_check_branch
          %1187 = sbr.rel (%p1185) target = $region60
        $region59: #{tpu_custom_call.1} parent=55 // pred_region
          %s1188 = sand.u32 %s182, 1
          %s1189 = scalar_lea.sflag [#allocation3], %s1188
          %s1190 = sand.u32 %s182, 1
          %s1191 = smul.addr %s1190, 128
          %s1192 = scalar_lea.vmem [#allocation2], %s1191
          %1193 = dma.done %s1189, 2048
        $region60: #{tpu_custom_call.1} parent=55 // pred_fallthru
          _
      $region56: #{tpu_custom_call.1} parent=5 // pred_fallthru
        _
    $region6: #{tpu_custom_call.1} parent=1 // loop_footer
      %s20 = sadd.s32 1, %s16
    $region7: #{tpu_custom_call.1} parent=1 // loop_footer_branch
      %15 = sbr.rel target = $region3
    $region8: #{tpu_custom_call.1} parent=1 // loop_exit
      _
    %1194 = vsyncpa [#allocation3], 1
    %s1195 = scalar_lea.sflag [#allocation3], 1
    %1196 = vsyncpa %s1195, 1

</llo_original>
